<compile_context>
chip_gen: v7x
topology: tpu7x:2x2x1
jax: 0.10.0
libtpu: 0.0.40
codegen_flags: <defaults>
</compile_context>

<pallas_src>
import functools

import jax
import jax.numpy as jnp
from jax.experimental import pallas as pl
from jax.experimental.pallas import tpu as pltpu


# ----------------------------- Pallas kernels ------------------------------ #

def _avg_kernel(x_ref, o_ref, acc_ref, *, n_total, tn, need_mask):
    # x_ref: (tb, tn, F) tile; o_ref: (tb, F); acc_ref: (tb, F) f32 scratch.
    k = pl.program_id(1)

    @pl.when(k == 0)
    def _init():
        acc_ref[...] = jnp.zeros_like(acc_ref)

    xv = x_ref[...].astype(jnp.float32)          # accumulate in f32 (bf16-safe)
    if need_mask:                                # ragged last N-tile: zero the pad
        idx = jax.lax.broadcasted_iota(jnp.int32, xv.shape, 1) + k * tn
        xv = jnp.where(idx < n_total, xv, 0.0)
    acc_ref[...] += jnp.sum(xv, axis=1)

    @pl.when(k == pl.num_programs(1) - 1)
    def _finalize():
        o_ref[...] = (acc_ref[...] * (1.0 / n_total)).astype(o_ref.dtype)


def _cls_kernel(x_ref, o_ref, *, row):
    # x_ref: (tb, ln, F) tail-block of the bag; take the last real row.
    o_ref[...] = x_ref[:, row, :]


def _attn_kernel(x_ref, w1_ref, b1_ref, w2_ref, b2_ref, o_ref):
    # x_ref: (tm, F); w1: (F, H); b1: (1, H); w2: (H, 1); b2: (1,1) in SMEM.
    x = x_ref[...].astype(jnp.float32)
    h = jnp.tanh(
        jnp.dot(x, w1_ref[...], preferred_element_type=jnp.float32) + b1_ref[...]
    )                                                                   # (tm, H)
    a = jnp.dot(h, w2_ref[...], preferred_element_type=jnp.float32) + b2_ref[0, 0]
    # F.softmax over the size-1 last dim -> identically 1.0 (reproduced exactly)
    a_max = jnp.max(a, axis=-1, keepdims=True)
    e = jnp.exp(a - a_max)
    a = e / jnp.sum(e, axis=-1, keepdims=True)                          # (tm, 1)
    # torch.bmm(A, x) with N == 1: per-row scalar times the row of x.
    o_ref[...] = (a * x).astype(o_ref.dtype)


# ------------------------------ JAX wrappers ------------------------------- #

def _batch_tile(B, tb_max=8):
    # Block second-to-last dims must be a multiple of 8 or the full dim.
    return B if B <= tb_max else tb_max


def aggregate_avg(x, *, tn_cap=None, vmem_budget_bytes=4 * 1024 * 1024):
    B, N, F = x.shape
    tb = _batch_tile(B)
    itemsize = jnp.dtype(x.dtype).itemsize
    if tn_cap is None:
        # Keep each pipelined input buffer around `vmem_budget_bytes` so the
        # double-buffered pipeline fits every generation's scoped VMEM (v7x incl.)
        tn_cap = max(8, (vmem_budget_bytes // max(1, tb * F * itemsize)) // 8 * 8)
    tn = N if N <= tn_cap else tn_cap
    grid = (pl.cdiv(B, tb), pl.cdiv(N, tn))      # batch parallel, reduction last
    need_mask = (N % tn) != 0
    kernel = functools.partial(_avg_kernel, n_total=N, tn=tn, need_mask=need_mask)
    return pl.pallas_call(
        kernel,
        out_shape=jax.ShapeDtypeStruct((B, F), x.dtype),
        grid=grid,
        in_specs=[pl.BlockSpec((tb, tn, F), lambda b, k: (b, k, 0))],
        out_specs=pl.BlockSpec((tb, F), lambda b, k: (b, 0)),
        scratch_shapes=[pltpu.VMEM((tb, F), jnp.float32)],
        compiler_params=pltpu.CompilerParams(
            dimension_semantics=("parallel", "arbitrary")),
    )(x)


def aggregate_cls(x):
    B, N, F = x.shape
    tb = _batch_tile(B)
    ln = N if N <= 8 else 8                      # smallest compliant tail block
    blk = (N - 1) // ln                          # N-block holding the last row
    row = (N - 1) % ln                           # position of last row in block
    kernel = functools.partial(_cls_kernel, row=row)
    return pl.pallas_call(
        kernel,
        out_shape=jax.ShapeDtypeStruct((B, F), x.dtype),
        grid=(pl.cdiv(B, tb),),
        in_specs=[pl.BlockSpec((tb, ln, F), lambda b: (b, blk, 0))],
        out_specs=pl.BlockSpec((tb, F), lambda b: (b, 0)),
        compiler_params=pltpu.CompilerParams(dimension_semantics=("parallel",)),
    )(x)


def aggregate_attn(x, w1, b1, w2, b2, *, tm_max=128):
    B, N, F = x.shape
    # torch.bmm(A, x) with A = attn(x) of shape (B, N, 1) only type-checks for N==1.
    assert N == 1, "reference 'attn' forward only type-checks for seq_len == 1"
    H = w1.shape[1]
    x2 = x.reshape(B, F)
    tm = B if B <= tm_max else tm_max
    out = pl.pallas_call(
        _attn_kernel,
        out_shape=jax.ShapeDtypeStruct((B, F), x.dtype),
        grid=(pl.cdiv(B, tm),),
        in_specs=[
            pl.BlockSpec((tm, F), lambda m: (m, 0)),
            pl.BlockSpec((F, H), lambda m: (0, 0)),   # weights resident across steps
            pl.BlockSpec((1, H), lambda m: (0, 0)),
            pl.BlockSpec((H, 1), lambda m: (0, 0)),
            pl.BlockSpec(memory_space=pltpu.MemorySpace.SMEM),  # b2 scalar
        ],
        out_specs=pl.BlockSpec((tm, F), lambda m: (m, 0)),
        compiler_params=pltpu.CompilerParams(dimension_semantics=("parallel",)),
    )(x2, w1, b1, w2, b2)
    # torch's x.squeeze(0): only drops the leading dim when it has size 1.
    if B == 1:
        return out                   # (1, F)
    return out[:, None, :]           # (B, 1, F)


class Aggregator:
    """JAX/Pallas port of the PyTorch Aggregator module."""

    def __init__(self, n_features=None, aggregation='avg', key=None):
        self.aggregation = aggregation
        if aggregation == 'avg':
            pass
        elif aggregation == 'attn':
            assert n_features is not None
            if key is None:
                key = jax.random.PRNGKey(0)
            h = n_features // 2
            k1, k2, k3, k4 = jax.random.split(key, 4)
            bound1 = n_features ** -0.5        # nn.Linear default init bounds
            bound2 = h ** -0.5
            self.w1 = jax.random.uniform(k1, (n_features, h), jnp.float32, -bound1, bound1)
            self.b1 = jax.random.uniform(k2, (1, h), jnp.float32, -bound1, bound1)
            self.w2 = jax.random.uniform(k3, (h, 1), jnp.float32, -bound2, bound2)
            self.b2 = jax.random.uniform(k4, (1, 1), jnp.float32, -bound2, bound2)
        elif aggregation == 'cls_token':
            pass
        else:
            raise NotImplementedError(
                'Aggregation [{}] is not implemented'.format(aggregation))

    def __call__(self, x):
        if self.aggregation == 'avg':
            return aggregate_avg(x)
        elif self.aggregation == 'attn':
            return aggregate_attn(x, self.w1, self.b1, self.w2, self.b2)
        elif self.aggregation == 'cls_token':
            return aggregate_cls(x)


# ---------------------------------- main ----------------------------------- #

if __name__ == "__main__":
    B, N, F = 2, 8, 32
    x = jax.random.normal(jax.random.PRNGKey(0), (B, N, F), dtype=jnp.float32)

    # avg aggregation (default)
    y_avg = jax.block_until_ready(Aggregator(aggregation='avg')(x))
    assert y_avg.shape == (B, F)
    assert jnp.allclose(y_avg, jnp.mean(x, axis=1), atol=1e-5)

    # avg on ragged shapes: exercises tiled-N reduction + partial batch blocks
    x_big = jax.random.normal(jax.random.PRNGKey(3), (10, 20, F), dtype=jnp.float32)
    y_big = jax.block_until_ready(aggregate_avg(x_big, tn_cap=8))
    assert y_big.shape == (10, F)
    assert jnp.allclose(y_big, jnp.mean(x_big, axis=1), atol=1e-5)

    # cls_token aggregation
    y_cls = jax.block_until_ready(Aggregator(aggregation='cls_token')(x))
    assert y_cls.shape == (B, F)
    assert jnp.allclose(y_cls, x[:, -1, :])

    y_cls_big = jax.block_until_ready(aggregate_cls(x_big))
    assert jnp.allclose(y_cls_big, x_big[:, -1, :])

    # attn aggregation (reference forward only type-checks with seq_len == 1)
    x_attn = jax.random.normal(jax.random.PRNGKey(1), (1, 1, F), dtype=jnp.float32)
    agg_attn = Aggregator(n_features=F, aggregation='attn', key=jax.random.PRNGKey(2))
    y_attn = jax.block_until_ready(agg_attn(x_attn))
    # softmax over a size-1 dim is 1.0, so bmm(A, x) == x; verify exact semantics
    assert y_attn.shape == (1, F)
    assert jnp.allclose(y_attn, x_attn[0], atol=1e-5)

    x_attn4 = jax.random.normal(jax.random.PRNGKey(4), (4, 1, F), dtype=jnp.float32)
    y_attn4 = jax.block_until_ready(agg_attn(x_attn4))
    assert y_attn4.shape == (4, 1, F)          # torch squeeze(0) is a no-op here
    assert jnp.allclose(y_attn4, x_attn4, atol=1e-5)

    print("KERNEL_OK")
</pallas_src>

<mosaic_0001>
module attributes {stable_mosaic.version = 11 : i64} {
  func.func @_avg_kernel(%arg0: i32, %arg1: i32, %arg2: memref<2x8x32xf32, #tpu.memory_space<vmem>>, %arg3: memref<2x32xf32, #tpu.memory_space<vmem>>, %arg4: memref<2x32xf32, #tpu.memory_space<vmem>>) attributes {dimension_semantics = [#tpu.dimension_semantics<parallel>, #tpu.dimension_semantics<arbitrary>], iteration_bounds = array<i64: 1, 1>, scalar_prefetch = 0 : i64, scratch_operands = 1 : i64, tpu.core_type = #tpu.core_type<tc>, window_params = [{transform_indices = @transform_0, window_bounds = array<i64: 2, 8, 32>}, {transform_indices = @transform_1, window_bounds = array<i64: 2, 32>}]} {
    %c0_i32 = arith.constant 0 : i32
    %0 = arith.cmpi eq, %arg1, %c0_i32 : i32
    %1 = arith.extui %0 : i1 to i32
    %c0_i32_0 = arith.constant 0 : i32
    %2 = arith.cmpi ne, %1, %c0_i32_0 : i32
    scf.if %2 {
      %cst_9 = arith.constant 0.000000e+00 : f32
      %11 = vector.broadcast %cst_9 : f32 to vector<2x32xf32>
      %c0_10 = arith.constant 0 : index
      %c0_11 = arith.constant 0 : index
      %12 = vector.load %arg4[%c0_10, %c0_11] : memref<2x32xf32, #tpu.memory_space<vmem>>, vector<2x32xf32>
      tpu.vector_store %arg4[%c0_10, %c0_11], %11 {strides = array<i32>} : memref<2x32xf32, #tpu.memory_space<vmem>>, vector<2x32xf32>,
    } else {
    }
    %c0 = arith.constant 0 : index
    %c0_1 = arith.constant 0 : index
    %c0_2 = arith.constant 0 : index
    %3 = vector.load %arg2[%c0, %c0_1, %c0_2] : memref<2x8x32xf32, #tpu.memory_space<vmem>>, vector<2x8x32xf32>
    %c0_3 = arith.constant 0 : index
    %c0_4 = arith.constant 0 : index
    %4 = vector.load %arg4[%c0_3, %c0_4] : memref<2x32xf32, #tpu.memory_space<vmem>>, vector<2x32xf32>
    %cst = arith.constant dense<0.000000e+00> : vector<2x32xf32>
    %5 = vector.multi_reduction <add>, %3, %cst [1] : vector<2x8x32xf32> to vector<2x32xf32>
    %6 = arith.addf %4, %5 : vector<2x32xf32>
    %c0_5 = arith.constant 0 : index
    %c0_6 = arith.constant 0 : index
    %7 = vector.load %arg4[%c0_5, %c0_6] : memref<2x32xf32, #tpu.memory_space<vmem>>, vector<2x32xf32>
    tpu.vector_store %arg4[%c0_5, %c0_6], %6 {strides = array<i32>} : memref<2x32xf32, #tpu.memory_space<vmem>>, vector<2x32xf32>,
    %c0_i32_7 = arith.constant 0 : i32
    %8 = arith.cmpi eq, %arg1, %c0_i32_7 : i32
    %9 = arith.extui %8 : i1 to i32
    %c0_i32_8 = arith.constant 0 : i32
    %10 = arith.cmpi ne, %9, %c0_i32_8 : i32
    scf.if %10 {
      %c0_9 = arith.constant 0 : index
      %c0_10 = arith.constant 0 : index
      %11 = vector.load %arg4[%c0_9, %c0_10] : memref<2x32xf32, #tpu.memory_space<vmem>>, vector<2x32xf32>
      %cst_11 = arith.constant 1.250000e-01 : f32
      %12 = vector.broadcast %cst_11 : f32 to vector<2x32xf32>
      %13 = arith.mulf %11, %12 : vector<2x32xf32>
      %c0_12 = arith.constant 0 : index
      %c0_13 = arith.constant 0 : index
      %14 = vector.load %arg3[%c0_12, %c0_13] : memref<2x32xf32, #tpu.memory_space<vmem>>, vector<2x32xf32>
      tpu.vector_store %arg3[%c0_12, %c0_13], %13 {strides = array<i32>} : memref<2x32xf32, #tpu.memory_space<vmem>>, vector<2x32xf32>,
    } else {
    }
    return
  }
  func.func @transform_0(%arg0: i32, %arg1: i32) -> (i32, i32, i32) {
    %c0_i32 = arith.constant 0 : i32
    %c0_i32_0 = arith.constant 0 : i32
    return %arg0, %arg1, %c0_i32 : i32, i32, i32
  }
  func.func @transform_1(%arg0: i32, %arg1: i32) -> (i32, i32) {
    %c0_i32 = arith.constant 0 : i32
    %c0_i32_0 = arith.constant 0 : i32
    return %arg0, %c0_i32 : i32, i32
  }
}

</mosaic_0001>

<llo_original>
// kernel: tpu_custom_call.1
$region0: #{tpu_custom_call.1}
  #allocation0 [shape = 'u32[]', space=smem, size = 0x4, offset = 0x4, fixed_abs, tag = 'smem constant byte address 0x4 - core index']
  #allocation1 [shape = 'u32[144,128]{1,0:T(1,128)}', space=vmem, size = 0x12000, scoped, tag = 'internal scratch']
  #allocation2 [shape = 'f32[2,32]{1,0:T(2,128)}', space=vmem, size = 0x400, scoped, tag = 'scratch operand']
  %s0 = inlined_call_operand.hbm [shape: f32[2,8,32], index: 0, kind: input, shape index: {}]
  %s1 = inlined_call_operand.hbm [shape: f32[2,32], index: 1, kind: output, shape index: {}]
  %s2 = sld [smem:[#allocation0]]
  $region26: #{tpu_custom_call.1} parent=0
    _
  %s4 = ssub.s32 1, %s2
  %s5 = scalar_select 0, %s4, %s2
  $region1: #{tpu_custom_call.1} parent=0
    #allocation3 [shape = 'u8[8192]{0}', space=vmem, size = 0x2000, scoped, tag = 'input window, operand 0, single buffered']
    #allocation4 [shape = 's32[1]{0}', space=sflag, size = 0x4, scoped, tag = 'scoped memory for tpu_custom_call.1']
    #allocation5 [shape = 's32[1]{0}', space=sflag, size = 0x4, scoped, tag = 'scoped memory for tpu_custom_call.1']
    #allocation6 [shape = 'u8[1024]{0}', space=vmem, size = 0x400, scoped, tag = 'output window, operand 0, single buffered']
    %6 = vsyncpa [#allocation4], 0
    %7 = vsyncpa [#allocation5], 0
    // Predicated region
    $region2: #{tpu_custom_call.1} parent=1 // pred_check
      _
    $region3: #{tpu_custom_call.1} parent=1 // pred_check_branch
      %9 = sbr.rel (0) target = $region5
    $region4: #{tpu_custom_call.1} parent=1 // pred_region
      %s11 = ssub.s32 256, 256
      %12 = vsyncadd [#allocation4], %s11
      %s13 = sshll.u32 [#allocation3], 4
      %s14 = int_to_ptr.vmem [resolvable:$true] %s13
      %19 = dma.hbm_to_vmem [thread:$0]  %s0, 256, %s14, [#allocation4], 128, 128, 8
    $region5: #{tpu_custom_call.1} parent=1 // pred_fallthru
      _
    // Predicated region
    $region6: #{tpu_custom_call.1} parent=1 // pred_check
      _
    $region7: #{tpu_custom_call.1} parent=1 // pred_check_branch
      %21 = sbr.rel (0) target = $region9
    $region8: #{tpu_custom_call.1} parent=1 // pred_region
      %22 = dma.done [#allocation4], 256
    $region9: #{tpu_custom_call.1} parent=1 // pred_fallthru
      _
    %p23 = scmp.eq.s32.totalorder 0, 0
    // Predicated region
    $region10: #{tpu_custom_call.1} parent=1 // pred_check
      %p24 = pneg %p23
    $region11: #{tpu_custom_call.1} parent=1 // pred_check_branch
      %26 = sbr.rel (%p24) target = $region13
    $region12: #{tpu_custom_call.1} parent=1 // pred_region
      %vm27 = vcmask 254976
      %28 = vst.msk [vmem:[#allocation2] sm:$0x3] %vm27, 0.0
    $region13: #{tpu_custom_call.1} parent=1 // pred_fallthru
      _
    %v29 = vld [vmem:[#allocation3] sm:$0xff]
    %v30 = vld [vmem:[#allocation3 + $0x8] sm:$0xff]
    %v31 = vld [vmem:[#allocation2] sm:$0x3]
    %vm32 = vcmask 261120
    %v33 = vsel %vm32, %v29, 0.0
    %v34 = vrot.slane %v33, 4
    %v35 = vadd.f32 %v33, %v34
    %v36 = vrot.slane %v35, 2
    %v37 = vadd.f32 %v35, %v36
    %v38 = vrot.slane %v37, 1
    %v39 = vadd.f32 %v37, %v38
    %v40 = vsel %vm32, %v30, 0.0
    %v41 = vrot.slane %v40, 4
    %v42 = vadd.f32 %v40, %v41
    %v43 = vrot.slane %v42, 2
    %v44 = vadd.f32 %v42, %v43
    %v45 = vrot.slane %v44, 1
    %v46 = vadd.f32 %v44, %v45
    %vm49 = vcmask 1041409
    %v50 = vsel %vm49, %v46, %v39
    %v52 = vadd.f32 %v31, %v50
    %vm53 = vcmask 254976
    %54 = vst.msk [vmem:[#allocation2] sm:$0x3] %vm53, %v52
    // Predicated region
    $region14: #{tpu_custom_call.1} parent=1 // pred_check
      %p55 = pneg %p23
    $region15: #{tpu_custom_call.1} parent=1 // pred_check_branch
      %57 = sbr.rel (%p55) target = $region17
    $region16: #{tpu_custom_call.1} parent=1 // pred_region
      %v58 = vld [vmem:[#allocation2] sm:$0x3]
      %v59 = vmul.f32 %v58, 0.125
      %60 = vst.msk [vmem:[#allocation6] sm:$0x3] %vm53, %v59
    $region17: #{tpu_custom_call.1} parent=1 // pred_fallthru
      _
    // Predicated region
    $region18: #{tpu_custom_call.1} parent=1 // pred_check
      _
    $region19: #{tpu_custom_call.1} parent=1 // pred_check_branch
      %62 = sbr.rel (0) target = $region21
    $region20: #{tpu_custom_call.1} parent=1 // pred_region
      %s64 = ssub.s32 32, 32
      %65 = vsyncadd [#allocation5], %s64
      %s67 = sshll.u32 [#allocation6], 4
      %s68 = int_to_ptr.vmem [resolvable:$true] %s67
      %70 = dma.vmem_to_hbm [thread:$0]  %s68, 32, %s1, [#allocation5]
    $region21: #{tpu_custom_call.1} parent=1 // pred_fallthru
      _
    // Predicated region
    $region22: #{tpu_custom_call.1} parent=1 // pred_check
      _
    $region23: #{tpu_custom_call.1} parent=1 // pred_check_branch
      %72 = sbr.rel (0) target = $region25
    $region24: #{tpu_custom_call.1} parent=1 // pred_region
      %73 = dma.done [#allocation5], 32
    $region25: #{tpu_custom_call.1} parent=1 // pred_fallthru
      _
    %74 = vsyncpa [#allocation4], 1
    %75 = vsyncpa [#allocation5], 1

</llo_original>
